<compile_context>
chip_gen: v6e
topology: v6e:2x2x1
jax: 0.10.0
libtpu: 0.0.40
codegen_flags: <defaults>
</compile_context>

<pallas_src>
import jax
import jax.numpy as jnp
from jax.experimental import pallas as pl
from jax.experimental.pallas import tpu as pltpu


def _round_up(v, m):
    return ((v + m - 1) // m) * m


def _rational_kernel(x_ref, w_ref, o_ref):
    # x_ref : [TB, C]   w_ref : [C, 2F]   o_ref : [TB, F]
    f = o_ref.shape[-1]
    y = jnp.dot(x_ref[...], w_ref[...], preferred_element_type=jnp.float32)
    n1 = y[:, :f]
    d1 = y[:, f:]
    # exact reciprocal (approx=False) keeps parity with the f32 reference;
    # still routes through the EUP instead of serializing the VPU on a divide.
    o_ref[...] = n1 * pl.reciprocal(d1 + 1.0, approx=False)


def coeffs_dictionary_rational_forward(x, w_num, w_den, *, block_b=512):
    """
    x     : [batch, n_combinations]           float32
    w_num : [n_features, n_combinations]      (torch Linear weight layout)
    w_den : [n_features, n_combinations - 1]  (torch Linear weight layout)
    returns [batch, n_features] float32
    """
    x = x.astype(jnp.float32)
    B, C = x.shape
    F = w_num.shape[0]

    # ---- weight prep (plain JAX glue; hoist/cache for static weights) ----
    wn_t = w_num.astype(jnp.float32).T                                  # [C, F]
    wd_t = jnp.concatenate(
        [jnp.zeros((1, F), jnp.float32), w_den.astype(jnp.float32).T],
        axis=0,
    )                                                                   # [C, F]
    w_cat = jnp.concatenate([wn_t, wd_t], axis=1)                       # [C, 2F]

    # ---- batch tiling ----
    # TB is a multiple of 8 (sublane alignment); pad B up to a multiple of TB.
    # Padded rows are zeros -> 0 / (0 + 1) = 0, sliced off afterwards.
    TB = min(block_b, _round_up(B, 8))
    TB = _round_up(TB, 8)
    B_pad = _round_up(B, TB)
    if B_pad != B:
        x = jnp.pad(x, ((0, B_pad - B), (0, 0)))
    grid = (B_pad // TB,)

    # Size the scoped-VMEM request to the actual working set (double-buffered
    # x/out tiles + resident fused weight), clamped so it is valid on v7x's
    # 64 MiB VMEM as well as v5e/v6e's 128 MiB.
    working_bytes = 4 * (2 * TB * C + 2 * TB * F + C * 2 * F)
    vmem_limit = int(min(max(2 * working_bytes, 16 << 20), 48 << 20))

    out = pl.pallas_call(
        _rational_kernel,
        out_shape=jax.ShapeDtypeStruct((B_pad, F), jnp.float32),
        grid=grid,
        in_specs=[
            pl.BlockSpec((TB, C), lambda i: (i, 0)),       # batch tile of x
            pl.BlockSpec((C, 2 * F), lambda i: (0, 0)),    # fused weight, VMEM-resident
        ],
        out_specs=pl.BlockSpec((TB, F), lambda i: (i, 0)),
        compiler_params=pltpu.CompilerParams(
            dimension_semantics=("parallel",),             # independent batch tiles
            vmem_limit_bytes=vmem_limit,
        ),
    )(x, w_cat)

    return out[:B] if B_pad != B else out


def _reference_forward(x, w_num, w_den):
    x = x.astype(jnp.float32)
    n1 = x @ w_num.T
    d1 = x[:, 1:] @ w_den.T
    return n1 / (d1 + 1.0)


if __name__ == "__main__":
    n_combinations = 32
    n_features = 8

    key = jax.random.PRNGKey(0)
    kx, kn, kd, kx2 = jax.random.split(key, 4)

    # The PyTorch module zero-initialises its weights; small random weights
    # are used here so the rational math is actually exercised (forward-pass
    # semantics are identical either way).
    w_num = 0.1 * jax.random.normal(kn, (n_features, n_combinations), dtype=jnp.float32)
    w_den = 0.1 * jax.random.normal(kd, (n_features, n_combinations - 1), dtype=jnp.float32)

    # Case 1: multi-step grid (batch 64, tile 16 -> grid (4,)), exercises the
    # batch-tiled pipelined path.
    batch = 64
    x = jax.random.normal(kx, (batch, n_combinations), dtype=jnp.float32)
    out = coeffs_dictionary_rational_forward(x, w_num, w_den, block_b=16)
    out = jax.block_until_ready(out)
    ref = _reference_forward(x, w_num, w_den)
    assert out.shape == (batch, n_features)
    assert jnp.allclose(out, ref, atol=1e-5, rtol=1e-5), "mismatch vs reference (tiled)"

    # Case 2: unaligned batch (exercises the zero-padding path).
    x2 = jax.random.normal(kx2, (10, n_combinations), dtype=jnp.float32)
    out2 = jax.block_until_ready(
        coeffs_dictionary_rational_forward(x2, w_num, w_den)
    )
    ref2 = _reference_forward(x2, w_num, w_den)
    assert out2.shape == (10, n_features)
    assert jnp.allclose(out2, ref2, atol=1e-5, rtol=1e-5), "mismatch vs reference (padded)"

    # Case 3: the module's literal zero-init case (output must be all zeros).
    out_zero = jax.block_until_ready(
        coeffs_dictionary_rational_forward(
            x,
            jnp.zeros((n_features, n_combinations), jnp.float32),
            jnp.zeros((n_features, n_combinations - 1), jnp.float32),
        )
    )
    assert jnp.allclose(out_zero, jnp.zeros_like(out_zero))

    print("KERNEL_OK")
</pallas_src>

<mosaic_0001>
module attributes {stable_mosaic.version = 11 : i64} {
  func.func @_rational_kernel(%arg0: i32, %arg1: memref<16x32xf32, #tpu.memory_space<vmem>>, %arg2: memref<32x16xf32, #tpu.memory_space<vmem>>, %arg3: memref<16x8xf32, #tpu.memory_space<vmem>>) attributes {dimension_semantics = [#tpu.dimension_semantics<parallel>], iteration_bounds = array<i64: 4>, scalar_prefetch = 0 : i64, scratch_operands = 0 : i64, tpu.core_type = #tpu.core_type<tc>, window_params = [{transform_indices = @transform_0, window_bounds = array<i64: 16, 32>}, {pipeline_mode = #tpu.pipeline_mode<synchronous>, transform_indices = @transform_1, window_bounds = array<i64: 32, 16>}, {transform_indices = @transform_2, window_bounds = array<i64: 16, 8>}]} {
    %c0 = arith.constant 0 : index
    %c0_0 = arith.constant 0 : index
    %0 = vector.load %arg1[%c0, %c0_0] : memref<16x32xf32, #tpu.memory_space<vmem>>, vector<16x32xf32>
    %c0_1 = arith.constant 0 : index
    %c0_2 = arith.constant 0 : index
    %1 = vector.load %arg2[%c0_1, %c0_2] : memref<32x16xf32, #tpu.memory_space<vmem>>, vector<32x16xf32>
    %cst = arith.constant dense<0.000000e+00> : vector<16x16xf32>
    %2 = tpu.matmul %0, %1, %cst {dimension_numbers = #tpu.dot_dimension_numbers<[1], [0], [0], [1], [0, 0, 1, 1], [], []>} : vector<16x32xf32>, vector<32x16xf32>, vector<16x16xf32> -> vector<16x16xf32>
    %3 = vector.extract_strided_slice %2 {offsets = [0, 0], sizes = [16, 8], strides = [1, 1]} : vector<16x16xf32> to vector<16x8xf32>
    %4 = vector.extract_strided_slice %2 {offsets = [0, 8], sizes = [16, 8], strides = [1, 1]} : vector<16x16xf32> to vector<16x8xf32>
    %cst_3 = arith.constant 1.000000e+00 : f32
    %5 = vector.broadcast %cst_3 : f32 to vector<16x8xf32>
    %6 = arith.addf %4, %5 : vector<16x8xf32>
    %7 = tpu.reciprocal %6 : vector<16x8xf32> -> vector<16x8xf32>
    %8 = arith.mulf %3, %7 : vector<16x8xf32>
    %c0_4 = arith.constant 0 : index
    %c0_5 = arith.constant 0 : index
    %9 = vector.load %arg3[%c0_4, %c0_5] : memref<16x8xf32, #tpu.memory_space<vmem>>, vector<16x8xf32>
    tpu.vector_store %arg3[%c0_4, %c0_5], %8 {strides = array<i32>} : memref<16x8xf32, #tpu.memory_space<vmem>>, vector<16x8xf32>,
    return
  }
  func.func @transform_0(%arg0: i32) -> (i32, i32) {
    %c0_i32 = arith.constant 0 : i32
    %c0_i32_0 = arith.constant 0 : i32
    return %arg0, %c0_i32 : i32, i32
  }
  func.func @transform_1(%arg0: i32) -> (i32, i32) {
    %c0_i32 = arith.constant 0 : i32
    %c0_i32_0 = arith.constant 0 : i32
    %c0_i32_1 = arith.constant 0 : i32
    return %c0_i32, %c0_i32_0 : i32, i32
  }
  func.func @transform_2(%arg0: i32) -> (i32, i32) {
    %c0_i32 = arith.constant 0 : i32
    %c0_i32_0 = arith.constant 0 : i32
    return %arg0, %c0_i32 : i32, i32
  }
}

</mosaic_0001>

<llo_original>
// kernel: tpu_custom_call.1
$region0: #{tpu_custom_call.1}
  #allocation0 [shape = 'u32[]', space=smem, size = 0x4, offset = 0x4, fixed_abs, tag = 'smem constant byte address 0x4 - core index']
  #allocation1 [shape = 'u32[144,128]{1,0:T(1,128)}', space=vmem, size = 0x12000, scoped, tag = 'internal scratch']
  %s0 = inlined_call_operand.vmem [shape: f32[64,32], index: 0, kind: input, shape index: {}]
  %s1 = inlined_call_operand.vmem [shape: f32[32,16], index: 1, kind: input, shape index: {}]
  %s2 = inlined_call_operand.vmem [shape: f32[64,8], index: 2, kind: output, shape index: {}]
  %s3 = sld [smem:[#allocation0]]
  $region41: #{tpu_custom_call.1} parent=0
    _
  %s5 = ssub.s32 1, %s3
  %s6 = scalar_select 0, %s5, %s3
  loop: start=0, step=1, limit=6
  $region2: #{tpu_custom_call.1} parent=0 // loop_pre_header
    _
  $region3: #{tpu_custom_call.1} parent=0 // loop_header
    %s8 = sphi 0, %s12
    %p9 = scmp.ge.s32.totalorder %s8, 6
    %s18 = sphi 0, %s20
    %s21 = sphi 0, %s18
    %s22 = sphi 0, %s21
    %s38 = sphi 0, %s22
    %s42 = sphi 0, %s42
    %s44 = sphi 0, %s42
    %s45 = sphi 0, %s44
    %s59 = sphi 0, %s45
    %s65 = sphi 0, %s67
    %s68 = sphi 0, %s65
    %s69 = sphi 0, %s68
    %s85 = sphi 0, %s69
  $region4: #{tpu_custom_call.1} parent=0 // loop_header_branch
    %11 = sbr.rel (%p9) target = $region8
  $region5: #{tpu_custom_call.1} parent=0 // loop_body
    %s13 = ssub.s32 %s8, 1
    %s14 = ssub.s32 %s8, 2
    %s15 = sadd.s32 %s8, 1
    %s16 = ssub.s32 %s8, %s15
    %p17 = scmp.eq.s32.totalorder %s16, 0
    %s19 = sadd.s32 %s18, 1
    %s20 = scalar_select %p17, %s18, %s19
    %p23 = pneg %p17
    %p24 = scmp.eq.s32.totalorder %s8, 3
    %p25 = por %p23, %p24
    %p26 = scmp.ne.s32.totalorder %s18, %s21
    %p27 = scmp.eq.s32.totalorder %s8, 0
    %p28 = por %p26, %p27
    %p29 = scmp.ne.s32.totalorder %s18, %s21
    %p30 = scmp.eq.s32.totalorder %s13, 3
    %p31 = por %p29, %p30
    %p32 = scmp.ne.s32.totalorder %s21, %s22
    %p33 = scmp.eq.s32.totalorder %s13, 0
    %p34 = por %p32, %p33
    %p35 = scmp.ne.s32.totalorder %s21, %s22
    %p36 = scmp.eq.s32.totalorder %s14, 3
    %p37 = por %p35, %p36
    %p39 = scmp.ne.s32.totalorder %s22, %s38
    %p40 = scmp.eq.s32.totalorder %s14, 0
    %p41 = por %p39, %p40
    %s43 = sadd.s32 %s42, 1
    %p46 = scmp.eq.s32.totalorder %s8, 3
    %p47 = scmp.ne.s32.totalorder %s42, %s44
    %p48 = scmp.eq.s32.totalorder %s8, 0
    %p49 = por %p47, %p48
    %p50 = scmp.ne.s32.totalorder %s42, %s44
    %p51 = scmp.eq.s32.totalorder %s13, 3
    %p52 = por %p50, %p51
    %p53 = scmp.ne.s32.totalorder %s44, %s45
    %p54 = scmp.eq.s32.totalorder %s13, 0
    %p55 = por %p53, %p54
    %p56 = scmp.ne.s32.totalorder %s44, %s45
    %p57 = scmp.eq.s32.totalorder %s14, 3
    %p58 = por %p56, %p57
    %p60 = scmp.ne.s32.totalorder %s45, %s59
    %p61 = scmp.eq.s32.totalorder %s14, 0
    %p62 = por %p60, %p61
    %s63 = ssub.s32 %s8, %s15
    %p64 = scmp.eq.s32.totalorder %s63, 0
    %s66 = sadd.s32 %s65, 1
    %s67 = scalar_select %p64, %s65, %s66
    %p70 = pneg %p64
    %p71 = scmp.eq.s32.totalorder %s8, 3
    %p72 = por %p70, %p71
    %p73 = scmp.ne.s32.totalorder %s65, %s68
    %p74 = scmp.eq.s32.totalorder %s8, 0
    %p75 = por %p73, %p74
    %p76 = scmp.ne.s32.totalorder %s65, %s68
    %p77 = scmp.eq.s32.totalorder %s13, 3
    %p78 = por %p76, %p77
    %p79 = scmp.ne.s32.totalorder %s68, %s69
    %p80 = scmp.eq.s32.totalorder %s13, 0
    %p81 = por %p79, %p80
    %p82 = scmp.ne.s32.totalorder %s68, %s69
    %p83 = scmp.eq.s32.totalorder %s14, 3
    %p84 = por %p82, %p83
    %p86 = scmp.ne.s32.totalorder %s69, %s85
    %p87 = scmp.eq.s32.totalorder %s14, 0
    %p88 = por %p86, %p87
    %p89 = scmp.le.s32.totalorder 1, %s8
    %p90 = scmp.lt.s32.totalorder %s8, 5
    %p91 = pnand %p89, %p90
    %p92 = pneg %p91
    // Predicated region
    $region9: #{tpu_custom_call.1} parent=5 // pred_check
      _
    $region10: #{tpu_custom_call.1} parent=5 // pred_check_branch
      %94 = sbr.rel (%p91) target = $region12
    $region11: #{tpu_custom_call.1} parent=5 // pred_region
      %s95 = ssub.s32 %s8, 1
      // Predicated region
      $region13: #{tpu_custom_call.1} parent=11 // pred_check
        %p96 = pneg %p55
      $region14: #{tpu_custom_call.1} parent=11 // pred_check_branch
        %98 = sbr.rel (%p96) target = $region16
      $region15: #{tpu_custom_call.1} parent=11 // pred_region
        _
      $region16: #{tpu_custom_call.1} parent=11 // pred_fallthru
        _
    $region12: #{tpu_custom_call.1} parent=5 // pred_fallthru
      _
    %p99 = scmp.lt.s32.totalorder %s8, 4
    // Predicated region
    $region17: #{tpu_custom_call.1} parent=5 // pred_check
      %p100 = pneg %p99
    $region18: #{tpu_custom_call.1} parent=5 // pred_check_branch
      %102 = sbr.rel (%p100) target = $region20
    $region19: #{tpu_custom_call.1} parent=5 // pred_region
      // Predicated region
      $region21: #{tpu_custom_call.1} parent=19 // pred_check
        %p103 = pneg %p28
      $region22: #{tpu_custom_call.1} parent=19 // pred_check_branch
        %105 = sbr.rel (%p103) target = $region24
      $region23: #{tpu_custom_call.1} parent=19 // pred_region
        %s106 = smul.u32 2, %s8
        %p107 = scmp.lt.s32.totalorder %s106, 7
        %s108 = scalar_select %p107, %s106, 7
        %s109 = smul.addr %s108, 8
        %s110 = scalar_lea.vmem %s0, %s109
        %s111 = smul.u32 2, %s8
      $region24: #{tpu_custom_call.1} parent=19 // pred_fallthru
        _
    $region20: #{tpu_custom_call.1} parent=5 // pred_fallthru
      _
    %p112 = scmp.le.s32.totalorder 1, %s8
    %p113 = scmp.lt.s32.totalorder %s8, 5
    %p114 = pnand %p112, %p113
    %p115 = pneg %p114
    // Predicated region
    $region25: #{tpu_custom_call.1} parent=5 // pred_check
      _
    $region26: #{tpu_custom_call.1} parent=5 // pred_check_branch
      %117 = sbr.rel (%p114) target = $region28
    $region27: #{tpu_custom_call.1} parent=5 // pred_region
      %s118 = ssub.s32 %s8, 1
      %s119 = smul.u32 2, %s13
      %p120 = scmp.lt.s32.totalorder %s119, 7
      %s121 = scalar_select %p120, %s119, 7
      %s122 = smul.addr %s121, 8
      %s123 = scalar_lea.vmem %s0, %s122
      %p124 = pneg %p34
      %p125 = pneg %p31
      %p126 = pneg %p55
      %p127 = pneg %p52
      %p128 = pneg %p81
      %p129 = pneg %p78
      %s130 = smul.u32 2, %s13
      %p131 = scmp.lt.s32.totalorder %s130, 7
      %s132 = scalar_select %p131, %s130, 7
      %s133 = smul.addr %s132, 8
      %s134 = scalar_lea.vmem %s2, %s133
      %s135 = smul.u32 2, %s13
      %p136 = scmp.lt.s32.totalorder %s135, 7
      %s137 = scalar_select %p136, %s135, 7
      %s138 = smul.addr %s137, 8
      %s139 = scalar_lea.vmem %s0, %s138
      %s140 = smul.u32 2, %s13
      %s141 = smul.u32 2, %s13
      %p142 = scmp.lt.s32.totalorder %s141, 7
      %s143 = scalar_select %p142, %s141, 7
      %s144 = smul.addr %s143, 8
      %s145 = scalar_lea.vmem %s2, %s144
      %s146 = smul.u32 2, %s13
      %v147 = vld [vmem:[%s139] sm:$0xff]
      %v148 = vld [vmem:[%s139 + $0x8] sm:$0xff]
      %v149 = vld [vmem:[%s1] sm:$0xff]
      %v150 = vld [vmem:[%s1 + $0x8] sm:$0xff]
      %v151 = vld [vmem:[%s1 + $0x10] sm:$0xff]
      %v152 = vld [vmem:[%s1 + $0x18] sm:$0xff]
      %vm153 = vcmask 261120
      %v155 = vsel %vm153, %v147, 0
      %v158 = vsel %vm153, %v148, 0
      %160 = vmatprep.subr.mxu0 0.0
      %161 = vmatpush1.msra.mxu0 0.0
      %162 = vmatprep.subr.mxu0 0.0
      %163 = vmatpush1.msra.mxu0 0.0
      %164 = vmatprep.subr.mxu0 0.0
      %165 = vmatpush1.msra.mxu0 0.0
      %166 = vmatprep.subr.mxu0 0.0
      %167 = vmatpush1.msra.mxu0 0.0
      %168 = vmatprep.subr.mxu0 0.0
      %169 = vmatpush1.msra.mxu0 0.0
      %170 = vmatprep.subr.mxu0 0.0
      %171 = vmatpush1.msra.mxu0 0.0
      %172 = vmatprep.subr.mxu0 0.0
      %173 = vmatpush1.msra.mxu0 0.0
      %174 = vmatprep.subr.mxu0 0.0
      %175 = vmatpush1.msra.mxu0 0.0
      %176 = vmatprep.subr.mxu0 0.0
      %177 = vmatpush1.msra.mxu0 0.0
      %178 = vmatprep.subr.mxu0 0.0
      %179 = vmatpush1.msra.mxu0 0.0
      %180 = vmatprep.subr.mxu0 0.0
      %181 = vmatpush1.msra.mxu0 0.0
      %182 = vmatprep.subr.mxu0 0.0
      %183 = vmatpush1.msra.mxu0 0.0
      %184 = vmatprep.subr.mxu0 0.0
      %185 = vmatpush1.msra.mxu0 %v152
      %186 = vmatprep.subr.mxu0 0.0
      %187 = vmatpush1.msra.mxu0 %v151
      %188 = vmatprep.subr.mxu0 0.0
      %189 = vmatpush1.msra.mxu0 %v150
      %190 = vmatprep.subr.mxu0 0.0
      %191 = vmatpush1.msra.mxu0 %v149
      %192 = vmatprep.subr.mxu0 0.0
      %193 = vmatpush2.msra.mxu0 0.0
      %194 = vmatprep.subr.mxu0 0.0
      %195 = vmatpush2.msra.mxu0 0.0
      %196 = vmatprep.subr.mxu0 0.0
      %197 = vmatpush2.msra.mxu0 0.0
      %198 = vmatprep.subr.mxu0 0.0
      %199 = vmatpush2.msra.mxu0 0.0
      %200 = vmatprep.subr.mxu0 0.0
      %201 = vmatpush2.msra.mxu0 0.0
      %202 = vmatprep.subr.mxu0 0.0
      %203 = vmatpush2.msra.mxu0 0.0
      %204 = vmatprep.subr.mxu0 0.0
      %205 = vmatpush2.msra.mxu0 0.0
      %206 = vmatprep.subr.mxu0 0.0
      %207 = vmatpush2.msra.mxu0 0.0
      %208 = vmatprep.subr.mxu0 0.0
      %209 = vmatpush2.msra.mxu0 0.0
      %210 = vmatprep.subr.mxu0 0.0
      %211 = vmatpush2.msra.mxu0 0.0
      %212 = vmatprep.subr.mxu0 0.0
      %213 = vmatpush2.msra.mxu0 0.0
      %214 = vmatprep.subr.mxu0 0.0
      %215 = vmatpush2.msra.mxu0 0.0
      %216 = vmatprep.subr.mxu0 0.0
      %217 = vmatpush2.msra.mxu0 0.0
      %218 = vmatprep.subr.mxu0 0.0
      %219 = vmatpush2.msra.mxu0 0.0
      %220 = vmatprep.subr.mxu0 0.0
      %221 = vmatpush2.msra.mxu0 0.0
      %222 = vmatprep.subr.mxu0 0.0
      %223 = vmatpush2.msra.mxu0 0.0
      %224 = vmatprep.mubr.f32.mxu0 0.0
      %225 = vmatmul.mubr.f32.gmra.mxu0 %v155
      %v226 = vpop.f32.mrf.mxu0
      %v227 = vadd.f32 0.0, %v226
      %v228 = vpop.f32.mrf.mxu0
      %229 = vmatprep.mubr.f32.mxu0 0.0
      %230 = vmatmul.mubr.f32.gmra.mxu0 %v158
      %v231 = vpop.f32.mrf.mxu0
      %v232 = vadd.f32 0.0, %v231
      %v233 = vpop.f32.mrf.mxu0
      %234 = vdwg.mxu0
      %v235 = vadd.f32 %v227, 1.0
      %v236 = vadd.f32 %v232, 1.0
      %v237 = vrcp.pop %v235
      %v238 = vrcp.pop %v236
      %241 = vrot.lane.b32.xlu0 %v237, 120
      %v242 = vpop.permute.xlu0 %241
      %243 = vrot.lane.b32.xlu0 %v238, 120
      %v244 = vpop.permute.xlu0 %243
      %v247 = vmul.f32 %v227, %v242
      %v248 = vmul.f32 %v232, %v244
      %vm249 = vcmask 64512
      %250 = vst.msk [vmem:[%s145] sm:$0xff] %vm249, %v247
      %251 = vst.msk [vmem:[%s145 + $0x8] sm:$0xff] %vm249, %v248
      %s252 = smul.u32 2, %s13
      %p253 = scmp.lt.s32.totalorder %s252, 7
      %s254 = scalar_select %p253, %s252, 7
      %s255 = smul.addr %s254, 8
      %s256 = scalar_lea.vmem %s2, %s255
      // Predicated region
      $region29: #{tpu_custom_call.1} parent=27 // pred_check
        %p257 = pneg %p78
      $region30: #{tpu_custom_call.1} parent=27 // pred_check_branch
        %259 = sbr.rel (%p257) target = $region32
      $region31: #{tpu_custom_call.1} parent=27 // pred_region
        %s260 = smul.u32 2, %s13
      $region32: #{tpu_custom_call.1} parent=27 // pred_fallthru
        _
    $region28: #{tpu_custom_call.1} parent=5 // pred_fallthru
      _
    %p261 = scmp.le.s32.totalorder 2, %s8
    // Predicated region
    $region33: #{tpu_custom_call.1} parent=5 // pred_check
      %p262 = pneg %p261
    $region34: #{tpu_custom_call.1} parent=5 // pred_check_branch
      %264 = sbr.rel (%p262) target = $region36
    $region35: #{tpu_custom_call.1} parent=5 // pred_region
      %s265 = ssub.s32 %s8, 2
      // Predicated region
      $region37: #{tpu_custom_call.1} parent=35 // pred_check
        %p266 = pneg %p84
      $region38: #{tpu_custom_call.1} parent=35 // pred_check_branch
        %268 = sbr.rel (%p266) target = $region40
      $region39: #{tpu_custom_call.1} parent=35 // pred_region
        %s269 = smul.u32 2, %s14
        %p270 = scmp.lt.s32.totalorder %s269, 7
        %s271 = scalar_select %p270, %s269, 7
        %s272 = smul.addr %s271, 8
        %s273 = scalar_lea.vmem %s2, %s272
      $region40: #{tpu_custom_call.1} parent=35 // pred_fallthru
        _
    $region36: #{tpu_custom_call.1} parent=5 // pred_fallthru
      _
  $region6: #{tpu_custom_call.1} parent=0 // loop_footer
    %s12 = sadd.s32 1, %s8
  $region7: #{tpu_custom_call.1} parent=0 // loop_footer_branch
    %7 = sbr.rel target = $region3
  $region8: #{tpu_custom_call.1} parent=0 // loop_exit
    _

</llo_original>
